<compile_context>
chip_gen: v6e
topology: v6e:2x2x1
jax: 0.10.0
libtpu: 0.0.40
codegen_flags: <defaults>
</compile_context>

<pallas_src>
import jax
import jax.numpy as jnp
from jax.experimental import pallas as pl
from jax.experimental.pallas import tpu as pltpu

_LANE = 128
_MAX_LANE_TILE = 64 * 1024  # 64K lanes per block; keeps per-row tile bytes bounded


def _b2relu_kernel(x_ref, bias_ref, o_ref):
    # x_ref:    (TB, TF) tile of rows/lanes for this grid step
    # bias_ref: (1, TF)  matching bias lanes (resident across row blocks)
    # Elementwise broadcast-add + ReLU on the VPU.
    o_ref[...] = jnp.maximum(x_ref[...] + bias_ref[...], 0).astype(o_ref.dtype)


def _sublane_multiple(dtype) -> int:
    itemsize = jnp.dtype(dtype).itemsize
    return {4: 8, 2: 16, 1: 32}.get(itemsize, 8)


def b2relu(x, bias, *, target_tile_bytes=2 << 20):
    """relu(bias + x).

    x:    (B, S1, S2)
    bias: (1, S1, S2)  (broadcasts over the batch dim, as in the PyTorch module)
    """
    B, S1, S2 = x.shape
    assert bias.shape == (1, S1, S2)

    dtype = x.dtype
    itemsize = jnp.dtype(dtype).itemsize
    sublane = _sublane_multiple(dtype)

    # Lane-dense 2-D views, padded so the trailing dim is a multiple of 128.
    F = S1 * S2
    F_pad = ((F + _LANE - 1) // _LANE) * _LANE
    xf = x.reshape(B, F)
    bf = bias.reshape(1, F)
    if F_pad != F:
        xf = jnp.pad(xf, ((0, 0), (0, F_pad - F)))
        bf = jnp.pad(bf, ((0, 0), (0, F_pad - F)))

    # Lane tile: full width when it fits, otherwise 128-aligned blocks capped
    # at 64K lanes (bounds per-row tile bytes for huge F; gives v7x a parallel
    # axis even when B is tiny).
    tf = F_pad if F_pad <= _MAX_LANE_TILE else _MAX_LANE_TILE

    # Row tile: aim for ~target_tile_bytes per tile, rounded to the packed
    # sublane multiple for this dtype, clamped to the batch.
    rows_target = max(1, target_tile_bytes // max(1, tf * itemsize))
    if rows_target >= B:
        tb = B  # whole batch fits one row block (block dim == full array dim)
    else:
        tb = max(sublane, (rows_target // sublane) * sublane)
        tb = min(tb, B)

    n_row = pl.cdiv(B, tb)
    n_lane = pl.cdiv(F_pad, tf)

    # v7x megacore guard: if the tensor is big enough to care about and we
    # somehow collapsed to a single grid step, split one axis so both
    # TensorCores get work.  (With the sizing above this is effectively a
    # no-op safety net — a single-tile grid implies <= target_tile_bytes.)
    total_bytes = B * F_pad * itemsize
    if n_row * n_lane < 2 and total_bytes > target_tile_bytes:
        if B >= 2 * sublane:
            tb = max(sublane, ((B // 2) // sublane) * sublane)
            n_row = pl.cdiv(B, tb)
        elif F_pad >= 2 * _LANE:
            tf = max(_LANE, ((F_pad // 2) // _LANE) * _LANE)
            n_lane = pl.cdiv(F_pad, tf)

    cost = pl.CostEstimate(
        flops=2 * B * F_pad,
        transcendentals=0,
        bytes_accessed=(2 * B * F_pad + F_pad) * itemsize,
    )

    out = pl.pallas_call(
        _b2relu_kernel,
        out_shape=jax.ShapeDtypeStruct((B, F_pad), dtype),
        grid_spec=pl.GridSpec(
            grid=(n_row, n_lane),
            in_specs=[
                # (tb, tf) tile of x rows/lanes per step.
                pl.BlockSpec((tb, tf), lambda i, j: (i, j)),
                # Bias: block index depends only on the lane axis, so it is
                # re-fetched only when j changes (and stays resident when
                # n_lane == 1).
                pl.BlockSpec((1, tf), lambda i, j: (0, j)),
            ],
            out_specs=pl.BlockSpec((tb, tf), lambda i, j: (i, j)),
        ),
        compiler_params=pltpu.CompilerParams(
            dimension_semantics=("parallel", "parallel"),
        ),
        cost_estimate=cost,
    )(xf, bf)

    if F_pad != F:
        out = out[:, :F]
    return out.reshape(B, S1, S2)


if __name__ == "__main__":
    key = jax.random.PRNGKey(0)
    kx, kb, kx2, kb2 = jax.random.split(key, 4)

    # Small shapes consistent with the module: batch=2, bias_shape1=16, bias_shape2=32
    B, S1, S2 = 2, 16, 32
    x = jax.random.normal(kx, (B, S1, S2), dtype=jnp.float32)

    # 1) Module-faithful init: nn.init.zeros_(self.bias)
    bias_zero = jnp.zeros((1, S1, S2), dtype=jnp.float32)
    out = jax.block_until_ready(b2relu(x, bias_zero))
    ref = jnp.maximum(bias_zero + x, 0.0)
    assert out.shape == (B, S1, S2)
    assert jnp.allclose(out, ref, atol=1e-6), "mismatch vs reference (zero bias)"

    # 2) Non-zero bias (as after training) to exercise the broadcast path.
    bias_rand = jax.random.normal(kb, (1, S1, S2), dtype=jnp.float32)
    out2 = jax.block_until_ready(b2relu(x, bias_rand))
    ref2 = jnp.maximum(bias_rand + x, 0.0)
    assert jnp.allclose(out2, ref2, atol=1e-6), "mismatch vs reference (random bias)"

    # 3) Ragged-F shape (9x9 electrode grid, F=81) to exercise the 128-lane
    #    padding path used for arbitrary model configs.
    xr = jax.random.normal(kx2, (4, 9, 9), dtype=jnp.float32)
    br = jax.random.normal(kb2, (1, 9, 9), dtype=jnp.float32)
    out3 = jax.block_until_ready(b2relu(xr, br))
    ref3 = jnp.maximum(br + xr, 0.0)
    assert jnp.allclose(out3, ref3, atol=1e-6), "mismatch vs reference (ragged F)"

    # 4) bf16 input to exercise dtype-aware sublane rounding.
    xb = x.astype(jnp.bfloat16)
    bb = bias_rand.astype(jnp.bfloat16)
    out4 = jax.block_until_ready(b2relu(xb, bb))
    ref4 = jnp.maximum(bb + xb, 0)
    assert jnp.allclose(out4.astype(jnp.float32), ref4.astype(jnp.float32),
                        atol=2e-2), "mismatch vs reference (bf16)"

    print("KERNEL_OK")
</pallas_src>

<mosaic_0001>
module attributes {stable_mosaic.version = 11 : i64} {
  func.func @_b2relu_kernel(%arg0: i32, %arg1: i32, %arg2: memref<2x512xf32, #tpu.memory_space<vmem>>, %arg3: memref<1x512xf32, #tpu.memory_space<vmem>>, %arg4: memref<2x512xf32, #tpu.memory_space<vmem>>) attributes {dimension_semantics = [#tpu.dimension_semantics<parallel>, #tpu.dimension_semantics<parallel>], iteration_bounds = array<i64: 1, 1>, scalar_prefetch = 0 : i64, scratch_operands = 0 : i64, tpu.core_type = #tpu.core_type<tc>, window_params = [{transform_indices = @transform_0, window_bounds = array<i64: 2, 512>}, {transform_indices = @transform_1, window_bounds = array<i64: 1, 512>}, {transform_indices = @transform_2, window_bounds = array<i64: 2, 512>}]} {
    %c0 = arith.constant 0 : index
    %c0_0 = arith.constant 0 : index
    %0 = vector.load %arg2[%c0, %c0_0] : memref<2x512xf32, #tpu.memory_space<vmem>>, vector<2x512xf32>
    %c0_1 = arith.constant 0 : index
    %c0_2 = arith.constant 0 : index
    %1 = vector.load %arg3[%c0_1, %c0_2] : memref<1x512xf32, #tpu.memory_space<vmem>>, vector<1x512xf32>
    %2 = vector.broadcast %1 : vector<1x512xf32> to vector<2x512xf32>
    %3 = arith.addf %0, %2 : vector<2x512xf32>
    %cst = arith.constant 0.000000e+00 : f32
    %4 = vector.broadcast %cst : f32 to vector<2x512xf32>
    %5 = arith.maximumf %3, %4 : vector<2x512xf32>
    %c0_3 = arith.constant 0 : index
    %c0_4 = arith.constant 0 : index
    %6 = vector.load %arg4[%c0_3, %c0_4] : memref<2x512xf32, #tpu.memory_space<vmem>>, vector<2x512xf32>
    tpu.vector_store %arg4[%c0_3, %c0_4], %5 {strides = array<i32>} : memref<2x512xf32, #tpu.memory_space<vmem>>, vector<2x512xf32>,
    return
  }
  func.func @transform_0(%arg0: i32, %arg1: i32) -> (i32, i32) {
    %c0_i32 = arith.constant 0 : i32
    return %arg0, %arg1 : i32, i32
  }
  func.func @transform_1(%arg0: i32, %arg1: i32) -> (i32, i32) {
    %c0_i32 = arith.constant 0 : i32
    %c0_i32_0 = arith.constant 0 : i32
    return %c0_i32, %arg1 : i32, i32
  }
  func.func @transform_2(%arg0: i32, %arg1: i32) -> (i32, i32) {
    %c0_i32 = arith.constant 0 : i32
    return %arg0, %arg1 : i32, i32
  }
}

</mosaic_0001>

<llo_original>
// kernel: tpu_custom_call.1
$region0: #{tpu_custom_call.1}
  #allocation0 [shape = 'u32[]', space=smem, size = 0x4, offset = 0x4, fixed_abs, tag = 'smem constant byte address 0x4 - core index']
  #allocation1 [shape = 'u32[144,128]{1,0:T(1,128)}', space=vmem, size = 0x12000, scoped, tag = 'internal scratch']
  %s0 = inlined_call_operand.hbm [shape: f32[2,512], index: 0, kind: input, shape index: {}]
  %s1 = inlined_call_operand.hbm [shape: f32[1,512], index: 1, kind: input, shape index: {}]
  %s2 = inlined_call_operand.hbm [shape: f32[2,512], index: 2, kind: output, shape index: {}]
  %s3 = sld [smem:[#allocation0]]
  $region26: #{tpu_custom_call.1} parent=0
    _
  %s5 = ssub.s32 1, %s3
  %s6 = scalar_select 0, %s5, %s3
  $region1: #{tpu_custom_call.1} parent=0
    #allocation2 [shape = 'u8[4096]{0}', space=vmem, size = 0x1000, scoped, tag = 'input window, operand 0, single buffered']
    #allocation3 [shape = 's32[1]{0}', space=sflag, size = 0x4, scoped, tag = 'scoped memory for tpu_custom_call.1']
    #allocation4 [shape = 's32[1]{0}', space=sflag, size = 0x4, scoped, tag = 'scoped memory for tpu_custom_call.1']
    #allocation5 [shape = 'u8[2048]{0}', space=vmem, size = 0x800, scoped, tag = 'input window, operand 1, single buffered']
    #allocation6 [shape = 's32[1]{0}', space=sflag, size = 0x4, scoped, tag = 'scoped memory for tpu_custom_call.1']
    #allocation7 [shape = 'u8[4096]{0}', space=vmem, size = 0x1000, scoped, tag = 'output window, operand 0, single buffered']
    %7 = vsyncpa [#allocation3], 0
    %8 = vsyncpa [#allocation6], 0
    %9 = vsyncpa [#allocation4], 0
    // Predicated region
    $region2: #{tpu_custom_call.1} parent=1 // pred_check
      _
    $region3: #{tpu_custom_call.1} parent=1 // pred_check_branch
      %11 = sbr.rel (0) target = $region5
    $region4: #{tpu_custom_call.1} parent=1 // pred_region
      %s13 = ssub.s32 128, 128
      %14 = vsyncadd [#allocation3], %s13
      %s16 = sshll.u32 [#allocation2], 4
      %s17 = int_to_ptr.vmem [resolvable:$true] %s16
      %19 = dma.hbm_to_vmem [thread:$0]  %s0, 128, %s17, [#allocation3]
    $region5: #{tpu_custom_call.1} parent=1 // pred_fallthru
      _
    // Predicated region
    $region6: #{tpu_custom_call.1} parent=1 // pred_check
      _
    $region7: #{tpu_custom_call.1} parent=1 // pred_check_branch
      %21 = sbr.rel (0) target = $region9
    $region8: #{tpu_custom_call.1} parent=1 // pred_region
      %s23 = ssub.s32 64, 64
      %24 = vsyncadd [#allocation6], %s23
      %s26 = sshll.u32 [#allocation5], 4
      %s27 = int_to_ptr.vmem [resolvable:$true] %s26
      %29 = dma.hbm_to_vmem [thread:$0]  %s1, 64, %s27, [#allocation6]
    $region9: #{tpu_custom_call.1} parent=1 // pred_fallthru
      _
    // Predicated region
    $region10: #{tpu_custom_call.1} parent=1 // pred_check
      _
    $region11: #{tpu_custom_call.1} parent=1 // pred_check_branch
      %31 = sbr.rel (0) target = $region13
    $region12: #{tpu_custom_call.1} parent=1 // pred_region
      %32 = dma.done [#allocation3], 128
    $region13: #{tpu_custom_call.1} parent=1 // pred_fallthru
      _
    // Predicated region
    $region14: #{tpu_custom_call.1} parent=1 // pred_check
      _
    $region15: #{tpu_custom_call.1} parent=1 // pred_check_branch
      %34 = sbr.rel (0) target = $region17
    $region16: #{tpu_custom_call.1} parent=1 // pred_region
      %35 = dma.done [#allocation6], 64
    $region17: #{tpu_custom_call.1} parent=1 // pred_fallthru
      _
    %v36 = vld [vmem:[#allocation2] sm:$0xff]
    %v37 = vld [vmem:[#allocation5] sm:$0xf]
    %v39 = vlaneseq
    %v40 = vshrl.u32 %v39, 7
    %v41 = vsub.s32 0, %v40
    %v42 = vrot.slane %v37, %v41
    %v43 = vlaneseq
    %v44 = vshrl.u32 %v43, 7
    %v45 = vsub.s32 1, %v44
    %v46 = vrot.slane %v37, %v45
    %v47 = vlaneseq
    %v48 = vshrl.u32 %v47, 7
    %v49 = vsub.s32 2, %v48
    %v50 = vrot.slane %v37, %v49
    %v51 = vlaneseq
    %v52 = vshrl.u32 %v51, 7
    %v53 = vsub.s32 3, %v52
    %v54 = vrot.slane %v37, %v53
    %v55 = vcombine.low %v42, %v46
    %v56 = vcombine.low %v50, %v54
    %v58 = vunpack.c.l.s4 1983009808
    %v59 = vunpack.c.0.s8 %v58
    %v60 = vlaneseq
    %v61 = vshrl.u32 %v60, 7
    %v62 = vsub.s32 %v59, %v61
    %v63 = vrot.slane %v55, %v62
    %v65 = vunpack.c.l.s4 1983009808
    %v66 = vunpack.c.0.s8 %v65
    %v67 = vlaneseq
    %v68 = vshrl.u32 %v67, 7
    %v69 = vsub.s32 %v66, %v68
    %v70 = vrot.slane %v56, %v69
    %v71 = vcombine.low %v63, %v70
    %v73 = vadd.f32 %v36, %v71
    %v74 = vmax.f32 %v73, 0.0
    %75 = vst [vmem:[#allocation7] sm:$0xff] %v74
    // Predicated region
    $region18: #{tpu_custom_call.1} parent=1 // pred_check
      _
    $region19: #{tpu_custom_call.1} parent=1 // pred_check_branch
      %77 = sbr.rel (0) target = $region21
    $region20: #{tpu_custom_call.1} parent=1 // pred_region
      %s79 = ssub.s32 128, 128
      %80 = vsyncadd [#allocation4], %s79
      %s82 = sshll.u32 [#allocation7], 4
      %s83 = int_to_ptr.vmem [resolvable:$true] %s82
      %85 = dma.vmem_to_hbm [thread:$0]  %s83, 128, %s2, [#allocation4]
    $region21: #{tpu_custom_call.1} parent=1 // pred_fallthru
      _
    // Predicated region
    $region22: #{tpu_custom_call.1} parent=1 // pred_check
      _
    $region23: #{tpu_custom_call.1} parent=1 // pred_check_branch
      %87 = sbr.rel (0) target = $region25
    $region24: #{tpu_custom_call.1} parent=1 // pred_region
      %88 = dma.done [#allocation4], 128
    $region25: #{tpu_custom_call.1} parent=1 // pred_fallthru
      _
    %89 = vsyncpa [#allocation3], 1
    %90 = vsyncpa [#allocation6], 1
    %91 = vsyncpa [#allocation4], 1

</llo_original>
